<compile_context>
chip_gen: v7x
topology: tpu7x:2x2x1
jax: 0.10.0
libtpu: 0.0.40
codegen_flags: <defaults>
</compile_context>

<pallas_src>
import jax
import jax.numpy as jnp
from jax import lax
from jax.experimental import pallas as pl
from jax.experimental.pallas import tpu as pltpu


def _round_up(a: int, m: int) -> int:
    return ((a + m - 1) // m) * m


def _mlp_kernel(x_ref, w1_ref, b1_ref, w2_ref, b2_ref, o_ref):
    # Layer 1, transposed so batch lands on lanes:
    #   h[j, i] = sum_k w1[j, k] * x[i, k]   -> (16, TILE_B), f32 MXU accumulate.
    h = lax.dot_general(
        w1_ref[...],            # (16, n_feat)
        x_ref[...],             # (TILE_B, n_feat)
        dimension_numbers=(((1,), (1,)), ((), ())),
        preferred_element_type=jnp.float32,
    )
    h = jnp.maximum(h + b1_ref[...], 0.0)          # (16, TILE_B) + (16, 1) broadcast

    # Layer 2 (out_features = 1): VPU multiply + cross-sublane (XLU) reduce instead of an
    # N=1 MXU matmul.  Result is lane-dense (1, TILE_B); bias comes from SMEM scalar.
    z = jnp.sum(h * w2_ref[...], axis=0, keepdims=True) + b2_ref[0, 0]

    o_ref[...] = jax.nn.sigmoid(z).astype(o_ref.dtype)


def _reference_math(x, w1, b1, w2, b2):
    h = jnp.maximum(x @ w1.T + b1[:, 0][None, :], 0.0)   # (B, 16)
    z = h @ w2 + b2[0, 0]                                 # (B, 1)
    return jax.nn.sigmoid(z)[:, 0]


def nodia_features_forward(x, w1, b1, w2, b2, *, tile_b=16384, min_pallas_batch=1024):
    """x: [B, n_feat] f32 (row-major).
    Weights in PyTorch-ish layouts:
      w1: [16, n_feat] (linear1.weight), b1: [16, 1]
      w2: [16, 1]      (fc.weight^T),    b2: [1, 1]
    Returns [B] f32 sigmoid probabilities (matches .squeeze(1))."""
    B, n_feat = x.shape
    hidden = w1.shape[0]

    # Small-batch fast path: pallas_call launch + pipeline warm-up dominates below ~1K
    # rows (the module's typical B=8 use); a fused XLA matmul+sigmoid is lower latency.
    if B < min_pallas_batch:
        return _reference_math(x, w1, b1, w2, b2)

    # Tile selection: big tiles to amortize the per-step overhead, but keep at least ~4
    # grid steps so v7x's two TensorCores both get work.  Multiple of 128 (lanes of the
    # lane-dense output block) and of 8 (sublanes of the x block).
    tile_b = max(128, min(tile_b, _round_up(pl.cdiv(B, 4), 128)))
    num_tiles = pl.cdiv(B, tile_b)          # ragged last tile handled by Pallas clipping

    cost = pl.CostEstimate(
        flops=2 * B * n_feat * hidden + 4 * B * hidden,
        transcendentals=B,
        bytes_accessed=B * n_feat * 4 + B * 4 + (hidden * n_feat + 2 * hidden + 1) * 4,
    )

    out = pl.pallas_call(
        _mlp_kernel,
        out_shape=jax.ShapeDtypeStruct((1, B), jnp.float32),
        grid=(num_tiles,),
        in_specs=[
            pl.BlockSpec((tile_b, n_feat), lambda i: (i, 0)),     # x tile (pipelined)
            pl.BlockSpec((hidden, n_feat), lambda i: (0, 0)),     # w1 (VMEM-resident)
            pl.BlockSpec((hidden, 1), lambda i: (0, 0)),          # b1 (resident)
            pl.BlockSpec((hidden, 1), lambda i: (0, 0)),          # w2 (resident)
            pl.BlockSpec(memory_space=pltpu.MemorySpace.SMEM),    # b2 scalar
        ],
        out_specs=pl.BlockSpec((1, tile_b), lambda i: (0, i)),    # lane-dense output
        compiler_params=pltpu.CompilerParams(
            dimension_semantics=("parallel",),
            vmem_limit_bytes=40 << 20,     # fits v5e's small scoped default, <=40MiB/v7x
        ),
        cost_estimate=cost,
    )(x, w1, b1, w2, b2)

    return out[0, :]


def init_params(key, n_feat=38, hidden=16):
    """Deterministic init mimicking PyTorch Linear default:
    U(-1/sqrt(fan_in), 1/sqrt(fan_in)) for weight and bias."""
    k1, k2, k3, k4 = jax.random.split(key, 4)
    bound1 = 1.0 / jnp.sqrt(jnp.float32(n_feat))
    bound2 = 1.0 / jnp.sqrt(jnp.float32(hidden))
    w1 = jax.random.uniform(k1, (hidden, n_feat), jnp.float32, -bound1, bound1)
    b1 = jax.random.uniform(k2, (hidden, 1), jnp.float32, -bound1, bound1)
    w2 = jax.random.uniform(k3, (hidden, 1), jnp.float32, -bound2, bound2)
    b2 = jax.random.uniform(k4, (1, 1), jnp.float32, -bound2, bound2)
    return w1, b1, w2, b2


if __name__ == "__main__":
    key = jax.random.PRNGKey(0)
    k_x1, k_x2, k_x3, k_p = jax.random.split(key, 4)

    n_feat = 38
    w1, b1, w2, b2 = init_params(k_p, n_feat=n_feat)

    # 1) Typical tiny batch (B=8): exercises the small-batch XLA fast path.
    B = 8
    x = jax.random.normal(k_x1, (B, n_feat), dtype=jnp.float32)
    out = jax.block_until_ready(nodia_features_forward(x, w1, b1, w2, b2))
    ref = _reference_math(x, w1, b1, w2, b2)
    assert out.shape == (B,), f"bad output shape {out.shape}"
    assert jnp.allclose(out, ref, atol=1e-5, rtol=1e-5), "mismatch vs reference (B=8)"

    # 2) Pallas path with a ragged last tile (B=1500 -> tile 384, 4 grid steps, last
    #    block clipped to 348 rows): exercises grid pipelining + edge-block handling.
    B2 = 1500
    x2 = jax.random.normal(k_x2, (B2, n_feat), dtype=jnp.float32)
    out2 = jax.block_until_ready(nodia_features_forward(x2, w1, b1, w2, b2))
    ref2 = _reference_math(x2, w1, b1, w2, b2)
    assert out2.shape == (B2,), f"bad output shape {out2.shape}"
    assert jnp.allclose(out2, ref2, atol=1e-5, rtol=1e-5), "mismatch vs reference (B=1500)"

    # 3) Pallas path, exact tile multiple (B=2048 -> tile 512, 4 grid steps, no ragged).
    B3 = 2048
    x3 = jax.random.normal(k_x3, (B3, n_feat), dtype=jnp.float32)
    out3 = jax.block_until_ready(nodia_features_forward(x3, w1, b1, w2, b2))
    ref3 = _reference_math(x3, w1, b1, w2, b2)
    assert out3.shape == (B3,), f"bad output shape {out3.shape}"
    assert jnp.allclose(out3, ref3, atol=1e-5, rtol=1e-5), "mismatch vs reference (B=2048)"

    print("KERNEL_OK")
</pallas_src>

<mosaic_0001>
module attributes {stable_mosaic.version = 11 : i64} {
  func.func @_mlp_kernel(%arg0: i32, %arg1: memref<384x38xf32, #tpu.memory_space<vmem>>, %arg2: memref<16x38xf32, #tpu.memory_space<vmem>>, %arg3: memref<16x1xf32, #tpu.memory_space<vmem>>, %arg4: memref<16x1xf32, #tpu.memory_space<vmem>>, %arg5: memref<1x1xf32, #tpu.memory_space<smem>>, %arg6: memref<1x384xf32, #tpu.memory_space<vmem>>) attributes {dimension_semantics = [#tpu.dimension_semantics<parallel>], iteration_bounds = array<i64: 4>, scalar_prefetch = 0 : i64, scratch_operands = 0 : i64, tpu.core_type = #tpu.core_type<tc>, window_params = [{transform_indices = @transform_0, window_bounds = array<i64: 384, 38>}, {pipeline_mode = #tpu.pipeline_mode<synchronous>, transform_indices = @transform_1, window_bounds = array<i64: 16, 38>}, {pipeline_mode = #tpu.pipeline_mode<synchronous>, transform_indices = @transform_2, window_bounds = array<i64: 16, 1>}, {pipeline_mode = #tpu.pipeline_mode<synchronous>, transform_indices = @transform_3, window_bounds = array<i64: 16, 1>}, {transform_indices = @transform_4, window_bounds = array<i64: 1, 1>}, {transform_indices = @transform_5, window_bounds = array<i64: 1, 384>}]} {
    %c0 = arith.constant 0 : index
    %c0_0 = arith.constant 0 : index
    %0 = vector.load %arg2[%c0, %c0_0] : memref<16x38xf32, #tpu.memory_space<vmem>>, vector<16x38xf32>
    %c0_1 = arith.constant 0 : index
    %c0_2 = arith.constant 0 : index
    %1 = vector.load %arg1[%c0_1, %c0_2] : memref<384x38xf32, #tpu.memory_space<vmem>>, vector<384x38xf32>
    %cst = arith.constant dense<0.000000e+00> : vector<16x384xf32>
    %2 = tpu.matmul %0, %1, %cst {dimension_numbers = #tpu.dot_dimension_numbers<[1], [1], [0], [0], [0, 0, 1, 0], [], []>} : vector<16x38xf32>, vector<384x38xf32>, vector<16x384xf32> -> vector<16x384xf32>
    %c0_3 = arith.constant 0 : index
    %c0_4 = arith.constant 0 : index
    %3 = vector.load %arg3[%c0_3, %c0_4] : memref<16x1xf32, #tpu.memory_space<vmem>>, vector<16x1xf32>
    %4 = vector.broadcast %3 : vector<16x1xf32> to vector<16x384xf32>
    %5 = arith.addf %2, %4 : vector<16x384xf32>
    %cst_5 = arith.constant 0.000000e+00 : f32
    %6 = vector.broadcast %cst_5 : f32 to vector<16x384xf32>
    %7 = arith.maximumf %5, %6 : vector<16x384xf32>
    %c0_6 = arith.constant 0 : index
    %c0_7 = arith.constant 0 : index
    %8 = vector.load %arg4[%c0_6, %c0_7] : memref<16x1xf32, #tpu.memory_space<vmem>>, vector<16x1xf32>
    %9 = vector.broadcast %8 : vector<16x1xf32> to vector<16x384xf32>
    %10 = arith.mulf %7, %9 : vector<16x384xf32>
    %cst_8 = arith.constant dense<0.000000e+00> : vector<384xf32>
    %11 = vector.multi_reduction <add>, %10, %cst_8 [0] : vector<16x384xf32> to vector<384xf32>
    %12 = vector.shape_cast %11 : vector<384xf32> to vector<1x384xf32>
    %c0_9 = arith.constant 0 : index
    %c0_10 = arith.constant 0 : index
    %13 = memref.load %arg5[%c0_9, %c0_10] : memref<1x1xf32, #tpu.memory_space<smem>>
    %14 = vector.broadcast %13 : f32 to vector<1x384xf32>
    %15 = arith.addf %12, %14 : vector<1x384xf32>
    %16 = arith.negf %15 : vector<1x384xf32>
    %17 = math.exp %16 : vector<1x384xf32>
    %cst_11 = arith.constant 1.000000e+00 : f32
    %18 = vector.broadcast %cst_11 : f32 to vector<1x384xf32>
    %19 = arith.addf %18, %17 : vector<1x384xf32>
    %20 = arith.divf %18, %19 : vector<1x384xf32>
    %c0_12 = arith.constant 0 : index
    %c0_13 = arith.constant 0 : index
    %21 = vector.load %arg6[%c0_12, %c0_13] : memref<1x384xf32, #tpu.memory_space<vmem>>, vector<1x384xf32>
    tpu.vector_store %arg6[%c0_12, %c0_13], %20 {strides = array<i32>} : memref<1x384xf32, #tpu.memory_space<vmem>>, vector<1x384xf32>,
    return
  }
  func.func @transform_0(%arg0: i32) -> (i32, i32) {
    %c0_i32 = arith.constant 0 : i32
    %c0_i32_0 = arith.constant 0 : i32
    return %arg0, %c0_i32 : i32, i32
  }
  func.func @transform_1(%arg0: i32) -> (i32, i32) {
    %c0_i32 = arith.constant 0 : i32
    %c0_i32_0 = arith.constant 0 : i32
    %c0_i32_1 = arith.constant 0 : i32
    return %c0_i32, %c0_i32_0 : i32, i32
  }
  func.func @transform_2(%arg0: i32) -> (i32, i32) {
    %c0_i32 = arith.constant 0 : i32
    %c0_i32_0 = arith.constant 0 : i32
    %c0_i32_1 = arith.constant 0 : i32
    return %c0_i32, %c0_i32_0 : i32, i32
  }
  func.func @transform_3(%arg0: i32) -> (i32, i32) {
    %c0_i32 = arith.constant 0 : i32
    %c0_i32_0 = arith.constant 0 : i32
    %c0_i32_1 = arith.constant 0 : i32
    return %c0_i32, %c0_i32_0 : i32, i32
  }
  func.func @transform_4(%arg0: i32) -> (i32, i32) {
    %c0_i32 = arith.constant 0 : i32
    %c0_i32_0 = arith.constant 0 : i32
    %c0_i32_1 = arith.constant 0 : i32
    return %c0_i32, %c0_i32_0 : i32, i32
  }
  func.func @transform_5(%arg0: i32) -> (i32, i32) {
    %c0_i32 = arith.constant 0 : i32
    %c0_i32_0 = arith.constant 0 : i32
    return %c0_i32, %arg0 : i32, i32
  }
}

</mosaic_0001>

<llo_original>
// kernel: tpu_custom_call.1
$region0: #{tpu_custom_call.1}
  #allocation0 [shape = 'u32[]', space=smem, size = 0x4, offset = 0x4, fixed_abs, tag = 'smem constant byte address 0x4 - core index']
  #allocation1 [shape = 'u32[144,128]{1,0:T(1,128)}', space=vmem, size = 0x12000, scoped, tag = 'internal scratch']
  #allocation2 [shape = 'f32[1,1]{1,0:T(1,128)S(6)}', space=smem, size = 0x200, scoped, tag = 'scoped memory for tpu_custom_call.1']
  %s0 = inlined_call_operand.vmem [shape: f32[1500,38], index: 0, kind: input, shape index: {}]
  %s1 = inlined_call_operand.vmem [shape: f32[16,38], index: 1, kind: input, shape index: {}]
  %s2 = inlined_call_operand.vmem [shape: f32[16,1], index: 2, kind: input, shape index: {}]
  %s3 = inlined_call_operand.vmem [shape: f32[16,1], index: 3, kind: input, shape index: {}]
  %s4 = inlined_call_operand.<no memory space> [shape: f32[1,1], index: 4, kind: input, shape index: {}]
  %s5 = inlined_call_operand.hbm [shape: f32[1,1500], index: 5, kind: output, shape index: {}]
  %s6 = sld [smem:[#allocation0]]
  $region53: #{tpu_custom_call.1} parent=0
    _
  %s8 = ssub.s32 1, %s6
  %s9 = scalar_select 0, %s8, %s6
  %10 = sst [smem:[#allocation2]] %s4
  $region1: #{tpu_custom_call.1} parent=0
    #allocation3 [shape = 'u8[3072]{0}', space=vmem, size = 0xc00, scoped, tag = 'output window, operand 0']
    #allocation4 [shape = 's32[2]{0}', space=sflag, size = 0x8, scoped, tag = 'scoped memory for tpu_custom_call.1']
    %11 = vsyncpa [#allocation4], 0
    %s12 = scalar_lea.sflag [#allocation4], 1
    %13 = vsyncpa %s12, 0
    loop: start=0, step=1, limit=6
    $region2: #{tpu_custom_call.1} parent=1 // loop_pre_header
      _
    $region3: #{tpu_custom_call.1} parent=1 // loop_header
      %s15 = sphi 0, %s19
      %p16 = scmp.ge.s32.totalorder %s15, 6
      %s25 = sphi 0, %s27
      %s28 = sphi 0, %s25
      %s29 = sphi 0, %s28
      %s45 = sphi 0, %s29
      %s49 = sphi 0, %s49
      %s51 = sphi 0, %s49
      %s52 = sphi 0, %s51
      %s66 = sphi 0, %s52
      %s70 = sphi 0, %s70
      %s72 = sphi 0, %s70
      %s73 = sphi 0, %s72
      %s87 = sphi 0, %s73
      %s91 = sphi 0, %s91
      %s93 = sphi 0, %s91
      %s94 = sphi 0, %s93
      %s108 = sphi 0, %s94
      %s112 = sphi 0, %s112
      %s114 = sphi 0, %s112
      %s115 = sphi 0, %s114
      %s129 = sphi 0, %s115
      %s135 = sphi 0, %s137
      %s138 = sphi 0, %s135
      %s139 = sphi 0, %s138
      %s155 = sphi 0, %s139
    $region4: #{tpu_custom_call.1} parent=1 // loop_header_branch
      %18 = sbr.rel (%p16) target = $region8
    $region5: #{tpu_custom_call.1} parent=1 // loop_body
      %s20 = ssub.s32 %s15, 1
      %s21 = ssub.s32 %s15, 2
      %s22 = sadd.s32 %s15, 1
      %s23 = ssub.s32 %s15, %s22
      %p24 = scmp.eq.s32.totalorder %s23, 0
      %s26 = sadd.s32 %s25, 1
      %s27 = scalar_select %p24, %s25, %s26
      %p30 = pneg %p24
      %p31 = scmp.eq.s32.totalorder %s15, 3
      %p32 = por %p30, %p31
      %p33 = scmp.ne.s32.totalorder %s25, %s28
      %p34 = scmp.eq.s32.totalorder %s15, 0
      %p35 = por %p33, %p34
      %p36 = scmp.ne.s32.totalorder %s25, %s28
      %p37 = scmp.eq.s32.totalorder %s20, 3
      %p38 = por %p36, %p37
      %p39 = scmp.ne.s32.totalorder %s28, %s29
      %p40 = scmp.eq.s32.totalorder %s20, 0
      %p41 = por %p39, %p40
      %p42 = scmp.ne.s32.totalorder %s28, %s29
      %p43 = scmp.eq.s32.totalorder %s21, 3
      %p44 = por %p42, %p43
      %p46 = scmp.ne.s32.totalorder %s29, %s45
      %p47 = scmp.eq.s32.totalorder %s21, 0
      %p48 = por %p46, %p47
      %s50 = sadd.s32 %s49, 1
      %p53 = scmp.eq.s32.totalorder %s15, 3
      %p54 = scmp.ne.s32.totalorder %s49, %s51
      %p55 = scmp.eq.s32.totalorder %s15, 0
      %p56 = por %p54, %p55
      %p57 = scmp.ne.s32.totalorder %s49, %s51
      %p58 = scmp.eq.s32.totalorder %s20, 3
      %p59 = por %p57, %p58
      %p60 = scmp.ne.s32.totalorder %s51, %s52
      %p61 = scmp.eq.s32.totalorder %s20, 0
      %p62 = por %p60, %p61
      %p63 = scmp.ne.s32.totalorder %s51, %s52
      %p64 = scmp.eq.s32.totalorder %s21, 3
      %p65 = por %p63, %p64
      %p67 = scmp.ne.s32.totalorder %s52, %s66
      %p68 = scmp.eq.s32.totalorder %s21, 0
      %p69 = por %p67, %p68
      %s71 = sadd.s32 %s70, 1
      %p74 = scmp.eq.s32.totalorder %s15, 3
      %p75 = scmp.ne.s32.totalorder %s70, %s72
      %p76 = scmp.eq.s32.totalorder %s15, 0
      %p77 = por %p75, %p76
      %p78 = scmp.ne.s32.totalorder %s70, %s72
      %p79 = scmp.eq.s32.totalorder %s20, 3
      %p80 = por %p78, %p79
      %p81 = scmp.ne.s32.totalorder %s72, %s73
      %p82 = scmp.eq.s32.totalorder %s20, 0
      %p83 = por %p81, %p82
      %p84 = scmp.ne.s32.totalorder %s72, %s73
      %p85 = scmp.eq.s32.totalorder %s21, 3
      %p86 = por %p84, %p85
      %p88 = scmp.ne.s32.totalorder %s73, %s87
      %p89 = scmp.eq.s32.totalorder %s21, 0
      %p90 = por %p88, %p89
      %s92 = sadd.s32 %s91, 1
      %p95 = scmp.eq.s32.totalorder %s15, 3
      %p96 = scmp.ne.s32.totalorder %s91, %s93
      %p97 = scmp.eq.s32.totalorder %s15, 0
      %p98 = por %p96, %p97
      %p99 = scmp.ne.s32.totalorder %s91, %s93
      %p100 = scmp.eq.s32.totalorder %s20, 3
      %p101 = por %p99, %p100
      %p102 = scmp.ne.s32.totalorder %s93, %s94
      %p103 = scmp.eq.s32.totalorder %s20, 0
      %p104 = por %p102, %p103
      %p105 = scmp.ne.s32.totalorder %s93, %s94
      %p106 = scmp.eq.s32.totalorder %s21, 3
      %p107 = por %p105, %p106
      %p109 = scmp.ne.s32.totalorder %s94, %s108
      %p110 = scmp.eq.s32.totalorder %s21, 0
      %p111 = por %p109, %p110
      %s113 = sadd.s32 %s112, 1
      %p116 = scmp.eq.s32.totalorder %s15, 3
      %p117 = scmp.ne.s32.totalorder %s112, %s114
      %p118 = scmp.eq.s32.totalorder %s15, 0
      %p119 = por %p117, %p118
      %p120 = scmp.ne.s32.totalorder %s112, %s114
      %p121 = scmp.eq.s32.totalorder %s20, 3
      %p122 = por %p120, %p121
      %p123 = scmp.ne.s32.totalorder %s114, %s115
      %p124 = scmp.eq.s32.totalorder %s20, 0
      %p125 = por %p123, %p124
      %p126 = scmp.ne.s32.totalorder %s114, %s115
      %p127 = scmp.eq.s32.totalorder %s21, 3
      %p128 = por %p126, %p127
      %p130 = scmp.ne.s32.totalorder %s115, %s129
      %p131 = scmp.eq.s32.totalorder %s21, 0
      %p132 = por %p130, %p131
      %s133 = ssub.s32 %s15, %s22
      %p134 = scmp.eq.s32.totalorder %s133, 0
      %s136 = sadd.s32 %s135, 1
      %s137 = scalar_select %p134, %s135, %s136
      %p140 = pneg %p134
      %p141 = scmp.eq.s32.totalorder %s15, 3
      %p142 = por %p140, %p141
      %p143 = scmp.ne.s32.totalorder %s135, %s138
      %p144 = scmp.eq.s32.totalorder %s15, 0
      %p145 = por %p143, %p144
      %p146 = scmp.ne.s32.totalorder %s135, %s138
      %p147 = scmp.eq.s32.totalorder %s20, 3
      %p148 = por %p146, %p147
      %p149 = scmp.ne.s32.totalorder %s138, %s139
      %p150 = scmp.eq.s32.totalorder %s20, 0
      %p151 = por %p149, %p150
      %p152 = scmp.ne.s32.totalorder %s138, %s139
      %p153 = scmp.eq.s32.totalorder %s21, 3
      %p154 = por %p152, %p153
      %p156 = scmp.ne.s32.totalorder %s139, %s155
      %p157 = scmp.eq.s32.totalorder %s21, 0
      %p158 = por %p156, %p157
      %p159 = scmp.le.s32.totalorder 1, %s15
      %p160 = scmp.lt.s32.totalorder %s15, 5
      %p161 = pnand %p159, %p160
      %p162 = pneg %p161
      // Predicated region
      $region9: #{tpu_custom_call.1} parent=5 // pred_check
        _
      $region10: #{tpu_custom_call.1} parent=5 // pred_check_branch
        %164 = sbr.rel (%p161) target = $region12
      $region11: #{tpu_custom_call.1} parent=5 // pred_region
        %s165 = ssub.s32 %s15, 1
        // Predicated region
        $region13: #{tpu_custom_call.1} parent=11 // pred_check
          %p166 = pneg %p62
        $region14: #{tpu_custom_call.1} parent=11 // pred_check_branch
          %168 = sbr.rel (%p166) target = $region16
        $region15: #{tpu_custom_call.1} parent=11 // pred_region
          _
        $region16: #{tpu_custom_call.1} parent=11 // pred_fallthru
          _
        // Predicated region
        $region17: #{tpu_custom_call.1} parent=11 // pred_check
          %p169 = pneg %p83
        $region18: #{tpu_custom_call.1} parent=11 // pred_check_branch
          %171 = sbr.rel (%p169) target = $region20
        $region19: #{tpu_custom_call.1} parent=11 // pred_region
          _
        $region20: #{tpu_custom_call.1} parent=11 // pred_fallthru
          _
        // Predicated region
        $region21: #{tpu_custom_call.1} parent=11 // pred_check
          %p172 = pneg %p104
        $region22: #{tpu_custom_call.1} parent=11 // pred_check_branch
          %174 = sbr.rel (%p172) target = $region24
        $region23: #{tpu_custom_call.1} parent=11 // pred_region
          _
        $region24: #{tpu_custom_call.1} parent=11 // pred_fallthru
          _
        // Predicated region
        $region25: #{tpu_custom_call.1} parent=11 // pred_check
          %p175 = pneg %p125
        $region26: #{tpu_custom_call.1} parent=11 // pred_check_branch
          %177 = sbr.rel (%p175) target = $region28
        $region27: #{tpu_custom_call.1} parent=11 // pred_region
          _
        $region28: #{tpu_custom_call.1} parent=11 // pred_fallthru
          _
      $region12: #{tpu_custom_call.1} parent=5 // pred_fallthru
        _
      %p178 = scmp.lt.s32.totalorder %s15, 4
      // Predicated region
      $region29: #{tpu_custom_call.1} parent=5 // pred_check
        %p179 = pneg %p178
      $region30: #{tpu_custom_call.1} parent=5 // pred_check_branch
        %181 = sbr.rel (%p179) target = $region32
      $region31: #{tpu_custom_call.1} parent=5 // pred_region
        // Predicated region
        $region33: #{tpu_custom_call.1} parent=31 // pred_check
          %p182 = pneg %p35
        $region34: #{tpu_custom_call.1} parent=31 // pred_check_branch
          %184 = sbr.rel (%p182) target = $region36
        $region35: #{tpu_custom_call.1} parent=31 // pred_region
          %s185 = smul.u32 48, %s15
          %s186 = ssub.s32 188, %s185
          %p187 = scmp.lt.s32.totalorder %s186, 48
          %s188 = scalar_select %p187, %s186, 48
          %s189 = smul.u32 128, %s188
          %p190 = scmp.lt.s32.totalorder %s185, 187
          %s191 = scalar_select %p190, %s185, 187
          %s192 = smul.addr %s191, 8
          %s193 = scalar_lea.vmem %s0, %s192
          %s194 = smul.u32 48, %s15
          %s195 = ssub.s32 188, %s194
          %p196 = scmp.lt.s32.totalorder %s195, 48
          %s197 = scalar_select %p196, %s195, 48
          %s198 = smul.u32 128, %s197
        $region36: #{tpu_custom_call.1} parent=31 // pred_fallthru
          _
      $region32: #{tpu_custom_call.1} parent=5 // pred_fallthru
        _
      %p199 = scmp.le.s32.totalorder 1, %s15
      %p200 = scmp.lt.s32.totalorder %s15, 5
      %p201 = pnand %p199, %p200
      %p202 = pneg %p201
      // Predicated region
      $region37: #{tpu_custom_call.1} parent=5 // pred_check
        _
      $region38: #{tpu_custom_call.1} parent=5 // pred_check_branch
        %204 = sbr.rel (%p201) target = $region40
      $region39: #{tpu_custom_call.1} parent=5 // pred_region
        %s205 = ssub.s32 %s15, 1
        %s206 = smul.u32 48, %s20
        %s207 = ssub.s32 188, %s206
        %p208 = scmp.lt.s32.totalorder %s207, 48
        %s209 = scalar_select %p208, %s207, 48
        %s210 = smul.u32 128, %s209
        %p211 = scmp.lt.s32.totalorder %s206, 187
        %s212 = scalar_select %p211, %s206, 187
        %s213 = smul.addr %s212, 8
        %s214 = scalar_lea.vmem %s0, %s213
        %p215 = pneg %p41
        %p216 = pneg %p38
        %p217 = pneg %p62
        %p218 = pneg %p59
        %p219 = pneg %p83
        %p220 = pneg %p80
        %p221 = pneg %p104
        %p222 = pneg %p101
        %p223 = pneg %p125
        %p224 = pneg %p122
        %p225 = pneg %p151
        %p226 = pneg %p148
        %s227 = sand.u32 %s138, 1
        %s228 = scalar_lea.sflag [#allocation4], %s227
        %s229 = sand.u32 %s138, 1
        %s230 = smul.addr %s229, 3
        %s231 = scalar_lea.vmem [#allocation3], %s230
        %s232 = smul.u32 48, %s20
        %s233 = ssub.s32 188, %s232
        %p234 = scmp.lt.s32.totalorder %s233, 48
        %s235 = scalar_select %p234, %s233, 48
        %s236 = smul.u32 128, %s235
        %p237 = scmp.lt.s32.totalorder %s232, 187
        %s238 = scalar_select %p237, %s232, 187
        %s239 = smul.addr %s238, 8
        %s240 = scalar_lea.vmem %s0, %s239
        %s241 = smul.u32 48, %s20
        %s242 = ssub.s32 188, %s241
        %p243 = scmp.lt.s32.totalorder %s242, 48
        %s244 = scalar_select %p243, %s242, 48
        %s245 = smul.u32 128, %s244
        %s246 = smul.u32 3, %s20
        %v247 = vld [vmem:[%s1] sm:$0xff]
        %v248 = vld [vmem:[%s1 + $0x8] sm:$0xff]
        %v249 = vld [vmem:[%s240] sm:$0xff]
        %v250 = vld [vmem:[%s240 + $0x8] sm:$0xff]
        %v251 = vld [vmem:[%s240 + $0x10] sm:$0xff]
        %v252 = vld [vmem:[%s240 + $0x18] sm:$0xff]
        %v253 = vld [vmem:[%s240 + $0x20] sm:$0xff]
        %v254 = vld [vmem:[%s240 + $0x28] sm:$0xff]
        %v255 = vld [vmem:[%s240 + $0x30] sm:$0xff]
        %v256 = vld [vmem:[%s240 + $0x38] sm:$0xff]
        %v257 = vld [vmem:[%s240 + $0x40] sm:$0xff]
        %v258 = vld [vmem:[%s240 + $0x48] sm:$0xff]
        %v259 = vld [vmem:[%s240 + $0x50] sm:$0xff]
        %v260 = vld [vmem:[%s240 + $0x58] sm:$0xff]
        %v261 = vld [vmem:[%s240 + $0x60] sm:$0xff]
        %v262 = vld [vmem:[%s240 + $0x68] sm:$0xff]
        %v263 = vld [vmem:[%s240 + $0x70] sm:$0xff]
        %v264 = vld [vmem:[%s240 + $0x78] sm:$0xff]
        %v265 = vld [vmem:[%s240 + $0x80] sm:$0xff]
        %v266 = vld [vmem:[%s240 + $0x88] sm:$0xff]
        %v267 = vld [vmem:[%s240 + $0x90] sm:$0xff]
        %v268 = vld [vmem:[%s240 + $0x98] sm:$0xff]
        %v269 = vld [vmem:[%s240 + $0xa0] sm:$0xff]
        %v270 = vld [vmem:[%s240 + $0xa8] sm:$0xff]
        %v271 = vld [vmem:[%s240 + $0xb0] sm:$0xff]
        %v272 = vld [vmem:[%s240 + $0xb8] sm:$0xff]
        %v273 = vld [vmem:[%s240 + $0xc0] sm:$0xff]
        %v274 = vld [vmem:[%s240 + $0xc8] sm:$0xff]
        %v275 = vld [vmem:[%s240 + $0xd0] sm:$0xff]
        %v276 = vld [vmem:[%s240 + $0xd8] sm:$0xff]
        %v277 = vld [vmem:[%s240 + $0xe0] sm:$0xff]
        %v278 = vld [vmem:[%s240 + $0xe8] sm:$0xff]
        %v279 = vld [vmem:[%s240 + $0xf0] sm:$0xff]
        %v280 = vld [vmem:[%s240 + $0xf8] sm:$0xff]
        %v281 = vld [vmem:[%s240 + $0x100] sm:$0xff]
        %v282 = vld [vmem:[%s240 + $0x108] sm:$0xff]
        %v283 = vld [vmem:[%s240 + $0x110] sm:$0xff]
        %v284 = vld [vmem:[%s240 + $0x118] sm:$0xff]
        %v285 = vld [vmem:[%s240 + $0x120] sm:$0xff]
        %v286 = vld [vmem:[%s240 + $0x128] sm:$0xff]
        %v287 = vld [vmem:[%s240 + $0x130] sm:$0xff]
        %v288 = vld [vmem:[%s240 + $0x138] sm:$0xff]
        %v289 = vld [vmem:[%s240 + $0x140] sm:$0xff]
        %v290 = vld [vmem:[%s240 + $0x148] sm:$0xff]
        %v291 = vld [vmem:[%s240 + $0x150] sm:$0xff]
        %v292 = vld [vmem:[%s240 + $0x158] sm:$0xff]
        %v293 = vld [vmem:[%s240 + $0x160] sm:$0xff]
        %v294 = vld [vmem:[%s240 + $0x168] sm:$0xff]
        %v295 = vld [vmem:[%s240 + $0x170] sm:$0xff]
        %v296 = vld [vmem:[%s240 + $0x178] sm:$0xff]
        %v297 = vld [vmem:[%s2] sm:$0xff]
        %v298 = vld [vmem:[%s2 + $0x8] sm:$0xff]
        %300 = vset.pattern.permute.xlu0 0
        %301 = vperm.xlu0 %300, %v297
        %v302 = vpop.permute.xlu0 %301
        %305 = vset.pattern.permute.xlu0 0
        %306 = vperm.xlu0 %305, %v298
        %v307 = vpop.permute.xlu0 %306
        %vm309 = vcmask 310272
        %v311 = vsel %vm309, %v247, 0
        %v314 = vsel %vm309, %v248, 0
        %v317 = vsel %vm309, %v249, 0
        %v320 = vsel %vm309, %v250, 0
        %v323 = vsel %vm309, %v251, 0
        %v326 = vsel %vm309, %v252, 0
        %v329 = vsel %vm309, %v253, 0
        %v332 = vsel %vm309, %v254, 0
        %v335 = vsel %vm309, %v255, 0
        %v338 = vsel %vm309, %v256, 0
        %v341 = vsel %vm309, %v257, 0
        %v344 = vsel %vm309, %v258, 0
        %v347 = vsel %vm309, %v259, 0
        %v350 = vsel %vm309, %v260, 0
        %v353 = vsel %vm309, %v261, 0
        %v356 = vsel %vm309, %v262, 0
        %v359 = vsel %vm309, %v263, 0
        %v362 = vsel %vm309, %v264, 0
        %v365 = vsel %vm309, %v265, 0
        %v368 = vsel %vm309, %v266, 0
        %v371 = vsel %vm309, %v267, 0
        %v374 = vsel %vm309, %v268, 0
        %v377 = vsel %vm309, %v269, 0
        %v380 = vsel %vm309, %v270, 0
        %v383 = vsel %vm309, %v271, 0
        %v386 = vsel %vm309, %v272, 0
        %v389 = vsel %vm309, %v273, 0
        %v392 = vsel %vm309, %v274, 0
        %v395 = vsel %vm309, %v275, 0
        %v398 = vsel %vm309, %v276, 0
        %v401 = vsel %vm309, %v277, 0
        %v404 = vsel %vm309, %v278, 0
        %v407 = vsel %vm309, %v279, 0
        %v410 = vsel %vm309, %v280, 0
        %v413 = vsel %vm309, %v281, 0
        %v416 = vsel %vm309, %v282, 0
        %v419 = vsel %vm309, %v283, 0
        %v422 = vsel %vm309, %v284, 0
        %v425 = vsel %vm309, %v285, 0
        %v428 = vsel %vm309, %v286, 0
        %v431 = vsel %vm309, %v287, 0
        %v434 = vsel %vm309, %v288, 0
        %v437 = vsel %vm309, %v289, 0
        %v440 = vsel %vm309, %v290, 0
        %v443 = vsel %vm309, %v291, 0
        %v446 = vsel %vm309, %v292, 0
        %v449 = vsel %vm309, %v293, 0
        %v452 = vsel %vm309, %v294, 0
        %v455 = vsel %vm309, %v295, 0
        %v458 = vsel %vm309, %v296, 0
        %460 = vmatprep.subr.mxu0 0.0
        %461 = vmatpush1.xpose.msra.mxu0 %v317
        %462 = vmatprep.subr.mxu0 0.0
        %463 = vmatpush1.xpose.msra.mxu0 %v320
        %464 = vmatprep.subr.mxu0 0.0
        %465 = vmatpush1.xpose.msra.mxu0 %v323
        %466 = vmatprep.subr.mxu0 0.0
        %467 = vmatpush1.xpose.msra.mxu0 %v326
        %468 = vmatprep.subr.mxu0 0.0
        %469 = vmatpush1.xpose.msra.mxu0 %v329
        %470 = vmatprep.subr.mxu0 0.0
        %471 = vmatpush1.xpose.msra.mxu0 %v332
        %472 = vmatprep.subr.mxu0 0.0
        %473 = vmatpush1.xpose.msra.mxu0 %v335
        %474 = vmatprep.subr.mxu0 0.0
        %475 = vmatpush1.xpose.msra.mxu0 %v338
        %476 = vmatprep.subr.mxu0 0.0
        %477 = vmatpush1.xpose.msra.mxu0 %v341
        %478 = vmatprep.subr.mxu0 0.0
        %479 = vmatpush1.xpose.msra.mxu0 %v344
        %480 = vmatprep.subr.mxu0 0.0
        %481 = vmatpush1.xpose.msra.mxu0 %v347
        %482 = vmatprep.subr.mxu0 0.0
        %483 = vmatpush1.xpose.msra.mxu0 %v350
        %484 = vmatprep.subr.mxu0 0.0
        %485 = vmatpush1.xpose.msra.mxu0 %v353
        %486 = vmatprep.subr.mxu0 0.0
        %487 = vmatpush1.xpose.msra.mxu0 %v356
        %488 = vmatprep.subr.mxu0 0.0
        %489 = vmatpush1.xpose.msra.mxu0 %v359
        %490 = vmatprep.subr.mxu0 0.0
        %491 = vmatpush1.xpose.msra.mxu0 %v362
        %492 = vmatprep.subr.mxu0 0.0
        %493 = vmatpush1.xpose.msra.mxu0 %v365
        %494 = vmatprep.subr.mxu0 0.0
        %495 = vmatpush1.xpose.msra.mxu0 %v368
        %496 = vmatprep.subr.mxu0 0.0
        %497 = vmatpush1.xpose.msra.mxu0 %v371
        %498 = vmatprep.subr.mxu0 0.0
        %499 = vmatpush1.xpose.msra.mxu0 %v374
        %500 = vmatprep.subr.mxu0 0.0
        %501 = vmatpush1.xpose.msra.mxu0 %v377
        %502 = vmatprep.subr.mxu0 0.0
        %503 = vmatpush1.xpose.msra.mxu0 %v380
        %504 = vmatprep.subr.mxu0 0.0
        %505 = vmatpush1.xpose.msra.mxu0 %v383
        %506 = vmatprep.subr.mxu0 0.0
        %507 = vmatpush1.xpose.msra.mxu0 %v386
        %508 = vmatprep.subr.mxu0 0.0
        %509 = vmatpush1.xpose.msra.mxu0 %v389
        %510 = vmatprep.subr.mxu0 0.0
        %511 = vmatpush1.xpose.msra.mxu0 %v392
        %512 = vmatprep.subr.mxu0 0.0
        %513 = vmatpush1.xpose.msra.mxu0 %v395
        %514 = vmatprep.subr.mxu0 0.0
        %515 = vmatpush1.xpose.msra.mxu0 %v398
        %516 = vmatprep.subr.mxu0 0.0
        %517 = vmatpush1.xpose.msra.mxu0 %v401
        %518 = vmatprep.subr.mxu0 0.0
        %519 = vmatpush1.xpose.msra.mxu0 %v404
        %520 = vmatprep.subr.mxu0 0.0
        %521 = vmatpush1.xpose.msra.mxu0 %v407
        %522 = vmatprep.subr.mxu0 0.0
        %523 = vmatpush1.xpose.msra.mxu0 %v410
        %524 = vmatprep.mubr.f32.mxu0 0.0
        %525 = vmatmul.mubr.f32.gmra.mrb[0].mxu0 %v311
        %v526 = vpop.f32.mrb[0].mxu0
        %v527 = vadd.f32 %v302, %v526
        %v528 = vpop.f32.mrb[0].mxu0
        %v529 = vadd.f32 %v302, %v528
        %530 = vmatprep.mubr.f32.mxu0 0.0
        %531 = vmatmul.mubr.f32.gmra.mrb[0].mxu0 %v314
        %v532 = vpop.f32.mrb[0].mxu0
        %v533 = vadd.f32 %v307, %v532
        %v534 = vpop.f32.mrb[0].mxu0
        %v535 = vadd.f32 %v307, %v534
        %536 = vdwg.mxu0
        %537 = vmatprep.subr.mxu0 0.0
        %538 = vmatpush1.xpose.msra.mxu0 %v413
        %539 = vmatprep.subr.mxu0 0.0
        %540 = vmatpush1.xpose.msra.mxu0 %v416
        %541 = vmatprep.subr.mxu0 0.0
        %542 = vmatpush1.xpose.msra.mxu0 %v419
        %543 = vmatprep.subr.mxu0 0.0
        %544 = vmatpush1.xpose.msra.mxu0 %v422
        %545 = vmatprep.subr.mxu0 0.0
        %546 = vmatpush1.xpose.msra.mxu0 %v425
        %547 = vmatprep.subr.mxu0 0.0
        %548 = vmatpush1.xpose.msra.mxu0 %v428
        %549 = vmatprep.subr.mxu0 0.0
        %550 = vmatpush1.xpose.msra.mxu0 %v431
        %551 = vmatprep.subr.mxu0 0.0
        %552 = vmatpush1.xpose.msra.mxu0 %v434
        %553 = vmatprep.subr.mxu0 0.0
        %554 = vmatpush1.xpose.msra.mxu0 %v437
        %555 = vmatprep.subr.mxu0 0.0
        %556 = vmatpush1.xpose.msra.mxu0 %v440
        %557 = vmatprep.subr.mxu0 0.0
        %558 = vmatpush1.xpose.msra.mxu0 %v443
        %559 = vmatprep.subr.mxu0 0.0
        %560 = vmatpush1.xpose.msra.mxu0 %v446
        %561 = vmatprep.subr.mxu0 0.0
        %562 = vmatpush1.xpose.msra.mxu0 %v449
        %563 = vmatprep.subr.mxu0 0.0
        %564 = vmatpush1.xpose.msra.mxu0 %v452
        %565 = vmatprep.subr.mxu0 0.0
        %566 = vmatpush1.xpose.msra.mxu0 %v455
        %567 = vmatprep.subr.mxu0 0.0
        %568 = vmatpush1.xpose.msra.mxu0 %v458
        %569 = vmatprep.subr.mxu0 0.0
        %570 = vmatpush1.xpose.msra.mxu0 0.0
        %571 = vmatprep.subr.mxu0 0.0
        %572 = vmatpush1.xpose.msra.mxu0 0.0
        %573 = vmatprep.subr.mxu0 0.0
        %574 = vmatpush1.xpose.msra.mxu0 0.0
        %575 = vmatprep.subr.mxu0 0.0
        %576 = vmatpush1.xpose.msra.mxu0 0.0
        %577 = vmatprep.subr.mxu0 0.0
        %578 = vmatpush1.xpose.msra.mxu0 0.0
        %579 = vmatprep.subr.mxu0 0.0
        %580 = vmatpush1.xpose.msra.mxu0 0.0
        %581 = vmatprep.subr.mxu0 0.0
        %582 = vmatpush1.xpose.msra.mxu0 0.0
        %583 = vmatprep.subr.mxu0 0.0
        %584 = vmatpush1.xpose.msra.mxu0 0.0
        %585 = vmatprep.subr.mxu0 0.0
        %586 = vmatpush1.xpose.msra.mxu0 0.0
        %587 = vmatprep.subr.mxu0 0.0
        %588 = vmatpush1.xpose.msra.mxu0 0.0
        %589 = vmatprep.subr.mxu0 0.0
        %590 = vmatpush1.xpose.msra.mxu0 0.0
        %591 = vmatprep.subr.mxu0 0.0
        %592 = vmatpush1.xpose.msra.mxu0 0.0
        %593 = vmatprep.subr.mxu0 0.0
        %594 = vmatpush1.xpose.msra.mxu0 0.0
        %595 = vmatprep.subr.mxu0 0.0
        %596 = vmatpush1.xpose.msra.mxu0 0.0
        %597 = vmatprep.subr.mxu0 0.0
        %598 = vmatpush1.xpose.msra.mxu0 0.0
        %599 = vmatprep.subr.mxu0 0.0
        %600 = vmatpush1.xpose.msra.mxu0 0.0
        %601 = vmatprep.mubr.f32.mxu0 0.0
        %602 = vmatmul.mubr.f32.gmra.mrb[0].mxu0 %v311
        %v603 = vpop.f32.mrb[0].mxu0
        %v604 = vadd.f32 %v302, %v603
        %v605 = vpop.f32.mrb[0].mxu0
        %606 = vmatprep.mubr.f32.mxu0 0.0
        %607 = vmatmul.mubr.f32.gmra.mrb[0].mxu0 %v314
        %v608 = vpop.f32.mrb[0].mxu0
        %v609 = vadd.f32 %v307, %v608
        %v610 = vpop.f32.mrb[0].mxu0
        %611 = vdwg.mxu0
        %v612 = vmax.f32 %v527, 0.0
        %v613 = vmax.f32 %v529, 0.0
        %v614 = vmax.f32 %v604, 0.0
        %v615 = vmax.f32 %v533, 0.0
        %v616 = vmax.f32 %v535, 0.0
        %v617 = vmax.f32 %v609, 0.0
        %v618 = vld [vmem:[%s3] sm:$0xff]
        %v619 = vld [vmem:[%s3 + $0x8] sm:$0xff]
        %621 = vset.pattern.permute.xlu0 0
        %622 = vperm.xlu0 %621, %v618
        %v623 = vpop.permute.xlu0 %622
        %626 = vset.pattern.permute.xlu0 0
        %627 = vperm.xlu0 %626, %v619
        %v628 = vpop.permute.xlu0 %627
        %v630 = vmul.f32 %v612, %v623
        %v631 = vmul.f32 %v613, %v623
        %v632 = vmul.f32 %v614, %v623
        %v633 = vmul.f32 %v615, %v628
        %v634 = vmul.f32 %v616, %v628
        %v635 = vmul.f32 %v617, %v628
        %v636 = vadd.f32 %v630, %v633
        %v637 = vrot.slane %v636, 4
        %v638 = vadd.f32 %v636, %v637
        %v639 = vrot.slane %v638, 2
        %v640 = vadd.f32 %v638, %v639
        %v641 = vrot.slane %v640, 1
        %v642 = vadd.f32 %v640, %v641
        %v643 = vadd.f32 %v631, %v634
        %v644 = vrot.slane %v643, 4
        %v645 = vadd.f32 %v643, %v644
        %v646 = vrot.slane %v645, 2
        %v647 = vadd.f32 %v645, %v646
        %v648 = vrot.slane %v647, 1
        %v649 = vadd.f32 %v647, %v648
        %v650 = vadd.f32 %v632, %v635
        %v651 = vrot.slane %v650, 4
        %v652 = vadd.f32 %v650, %v651
        %v653 = vrot.slane %v652, 2
        %v654 = vadd.f32 %v652, %v653
        %v655 = vrot.slane %v654, 1
        %v656 = vadd.f32 %v654, %v655
        %s657 = sld [smem:[#allocation2]]
        %v658 = vstv %s657
        %v659 = vadd.f32 %v642, %v658
        %v660 = vadd.f32 %v649, %v658
        %v661 = vadd.f32 %v656, %v658
        %v662 = vxor.u32 %v659, 2147483648
        %v663 = vxor.u32 %v660, 2147483648
        %v664 = vxor.u32 %v661, 2147483648
        %v665 = vmul.f32 %v662, 1.442695
        %v666 = vpow.pop %v665
        %v667 = vmul.f32 %v663, 1.442695
        %v668 = vpow.pop %v667
        %v669 = vmul.f32 %v664, 1.442695
        %v670 = vpow.pop %v669
        %v671 = vadd.f32 %v666, 1.0
        %v672 = vadd.f32 %v668, 1.0
        %v673 = vadd.f32 %v670, 1.0
        %v674 = vrcp.pop %v671
        %v675 = vmul.f32 1.0, %v674
        %v676 = vrcp.pop %v672
        %v677 = vmul.f32 1.0, %v676
        %v678 = vrcp.pop %v673
        %v679 = vmul.f32 1.0, %v678
        %v683 = vcombine.low %v675, %v677
        %v685 = vunpack.c.l.s4 1966171168
        %v686 = vunpack.c.0.s8 %v685
        %v687 = vlaneseq
        %v688 = vshrl.u32 %v687, 7
        %v689 = vsub.s32 %v686, %v688
        %v690 = vrot.slane %v683, %v689
        %v692 = vunpack.c.l.s4 1966171168
        %v693 = vunpack.c.0.s8 %v692
        %v694 = vlaneseq
        %v695 = vshrl.u32 %v694, 7
        %v696 = vsub.s32 %v693, %v695
        %v697 = vrot.slane %v679, %v696
        %v698 = vcombine.low %v690, %v697
        %v700 = vunpack.c.l.s4 1966171168
        %v701 = vunpack.c.0.s8 %v700
        %v702 = vlaneseq
        %v703 = vshrl.u32 %v702, 7
        %v704 = vsub.s32 %v701, %v703
        %v705 = vrot.slane %v698, %v704
        %v707 = vlaneseq
        %vm708 = vcmp.ge.s32.totalorder %v707, 0
        %vm709 = vcmp.lt.s32.totalorder %v707, 384
        %vm710 = vmand %vm708, %vm709
        %711 = vst.msk [vmem:[%s231] sm:$0x7] %vm710, %v705
        %s712 = sand.u32 %s138, 1
        %s713 = scalar_lea.sflag [#allocation4], %s712
        %s714 = sand.u32 %s138, 1
        %s715 = smul.addr %s714, 3
        %s716 = scalar_lea.vmem [#allocation3], %s715
        // Predicated region
        $region41: #{tpu_custom_call.1} parent=39 // pred_check
          %p717 = pneg %p148
        $region42: #{tpu_custom_call.1} parent=39 // pred_check_branch
          %719 = sbr.rel (%p717) target = $region44
        $region43: #{tpu_custom_call.1} parent=39 // pred_region
          %s720 = smul.u32 3, %s20
          %s722 = ssub.s32 48, 48
          %723 = vsyncadd %s713, %s722
          %s724 = smul.addr %s720, 16
          %s725 = scalar_lea.hbm %s5, %s724
          %s727 = sshll.u32 %s716, 4
          %s728 = int_to_ptr.vmem [resolvable:$true] %s727
          %730 = dma.vmem_to_hbm [thread:$0]  %s728, 48, %s725, %s713
        $region44: #{tpu_custom_call.1} parent=39 // pred_fallthru
          _
      $region40: #{tpu_custom_call.1} parent=5 // pred_fallthru
        _
      %p731 = scmp.le.s32.totalorder 2, %s15
      // Predicated region
      $region45: #{tpu_custom_call.1} parent=5 // pred_check
        %p732 = pneg %p731
      $region46: #{tpu_custom_call.1} parent=5 // pred_check_branch
        %734 = sbr.rel (%p732) target = $region48
      $region47: #{tpu_custom_call.1} parent=5 // pred_region
        %s735 = ssub.s32 %s15, 2
        // Predicated region
        $region49: #{tpu_custom_call.1} parent=47 // pred_check
          %p736 = pneg %p154
        $region50: #{tpu_custom_call.1} parent=47 // pred_check_branch
          %738 = sbr.rel (%p736) target = $region52
        $region51: #{tpu_custom_call.1} parent=47 // pred_region
          %s739 = sand.u32 %s139, 1
          %s740 = scalar_lea.sflag [#allocation4], %s739
          %s741 = sand.u32 %s139, 1
          %s742 = smul.addr %s741, 3
          %s743 = scalar_lea.vmem [#allocation3], %s742
          %744 = dma.done %s740, 48
        $region52: #{tpu_custom_call.1} parent=47 // pred_fallthru
          _
      $region48: #{tpu_custom_call.1} parent=5 // pred_fallthru
        _
    $region6: #{tpu_custom_call.1} parent=1 // loop_footer
      %s19 = sadd.s32 1, %s15
    $region7: #{tpu_custom_call.1} parent=1 // loop_footer_branch
      %14 = sbr.rel target = $region3
    $region8: #{tpu_custom_call.1} parent=1 // loop_exit
      _
    %745 = vsyncpa [#allocation4], 1
    %s746 = scalar_lea.sflag [#allocation4], 1
    %747 = vsyncpa %s746, 1

</llo_original>
